<compile_context>
chip_gen: v7x
topology: tpu7x:2x2x1
jax: 0.10.0
libtpu: 0.0.40
codegen_flags: <defaults>
</compile_context>

<pallas_src>
import jax
import jax.numpy as jnp
from jax.experimental import pallas as pl
from jax.experimental.pallas import tpu as pltpu

_INV_SQRT2 = 0.7071067811865476
# Abramowitz & Stegun 7.1.26 coefficients, pre-multiplied by GELU's 0.5 factor.
_HA1 = 0.5 * 0.254829592
_HA2 = 0.5 * -0.284496736
_HA3 = 0.5 * 1.421413741
_HA4 = 0.5 * -1.453152027
_HA5 = 0.5 * 1.061405429
_P = 0.3275911


def _gelu_exact(x):
    """Exact-erf GELU (matches torch.nn.GELU() to ~1e-6 abs).

    Uses gelu(x) = relu(x) - |x| * halfpoly(t) * exp(-z^2), z = |x|/sqrt(2),
    which removes the sign-select; the divide for t goes to the EUP.
    """
    ax = jnp.abs(x)
    z = ax * _INV_SQRT2
    t = pl.reciprocal(1.0 + _P * z, approx=True)                    # EUP slot
    halfpoly = t * (_HA1 + t * (_HA2 + t * (_HA3 + t * (_HA4 + t * _HA5))))
    return jnp.maximum(x, 0.0) - ax * halfpoly * jnp.exp(-(z * z))  # exp on EUP


def _mlp_kernel(x_ref, w1_ref, b1_ref, w2_ref, b2_ref, o_ref, acc_ref):
    # x_ref:  (TM, D_in)    row tile of flattened tokens (revisited across k)
    # w1_ref: (D_in, TK)    streamed hidden chunk of fc1
    # b1_ref: (1, TK)
    # w2_ref: (TK, D_out)   streamed hidden chunk of fc2
    # b2_ref: (1, D_out)    grid-constant
    # o_ref:  (TM, D_out)   written on the last hidden chunk
    # acc_ref:(TM, D_out)   f32 accumulator scratch (resident across k)
    k = pl.program_id(1)

    @pl.when(k == 0)
    def _():
        acc_ref[...] = jnp.zeros_like(acc_ref)

    x = x_ref[...].astype(w1_ref.dtype)                 # bf16 MXU operands
    h = jnp.dot(x, w1_ref[...], preferred_element_type=jnp.float32)
    h = h + b1_ref[...].astype(jnp.float32)
    h = _gelu_exact(h)                                  # f32 VPU/EUP math
    acc_ref[...] += jnp.dot(h.astype(w2_ref.dtype), w2_ref[...],
                            preferred_element_type=jnp.float32)

    @pl.when(k == pl.num_programs(1) - 1)
    def _():
        o_ref[...] = (acc_ref[...] + b2_ref[...].astype(jnp.float32)
                      ).astype(o_ref.dtype)


def _round_up(n, m):
    return ((n + m - 1) // m) * m


def _pick_hidden_tile(d_hid, max_tile):
    """Largest multiple-of-128 divisor of d_hid that is <= max_tile."""
    if d_hid <= max_tile:
        return d_hid
    top = max(128, (max_tile // 128) * 128)
    for cand in range(top, 127, -128):
        if d_hid % cand == 0:
            return cand
    return d_hid  # no 128-multiple divisor: keep weights fully resident


def mlp_pallas(x, w1, b1, w2, b2, *, block_rows=512, max_hidden_tile=512):
    """Fused MLP forward: gelu(x @ w1 + b1) @ w2 + b2 (dropout == identity)."""
    *lead, d_in = x.shape
    d_hid = w1.shape[1]
    d_out = w2.shape[1]
    assert w1.shape[0] == d_in and w2.shape[0] == d_hid
    assert b1.shape == (d_hid,) and b2.shape == (d_out,)

    x2 = x.reshape(-1, d_in)            # lane-dense (M, D_in) slab
    m = x2.shape[0]

    tk = _pick_hidden_tile(d_hid, max_hidden_tile)
    num_k = d_hid // tk
    assert num_k * tk == d_hid

    # Row tile: multiple of 8 (sublane); shrink until the VMEM estimate fits.
    tm = min(_round_up(block_rows, 8), _round_up(m, 8))

    def vmem_estimate(tm_):
        return (2 * tm_ * d_in * x2.dtype.itemsize        # x tiles (dbl-buf)
                + 2 * d_in * tk * w1.dtype.itemsize        # w1 chunks
                + 2 * tk * 4                               # b1 chunks
                + 2 * tk * d_out * w2.dtype.itemsize       # w2 chunks
                + 2 * d_out * 4                            # b2
                + 2 * tm_ * d_out * x2.dtype.itemsize      # out tiles
                + tm_ * d_out * 4                          # f32 accumulator
                + 6 * tm_ * tk * 4)                        # hidden act + GELU temps

    budget = 40 << 20   # headroom below v7x's 64 MiB physical VMEM per TC
    while vmem_estimate(tm) > budget and tm > 8:
        tm = max(8, _round_up(tm // 2, 8))

    # Keep both v7x TensorCores busy: prefer >= 2 row tiles when possible.
    if m > 8 and tm >= m:
        tm = _round_up(pl.cdiv(m, 2), 8)

    grid = (pl.cdiv(m, tm), num_k)   # ragged last row tile -> masked writeback

    itemsize = x2.dtype.itemsize
    cost = pl.CostEstimate(
        flops=int(2 * m * d_hid * (d_in + d_out)),
        transcendentals=int(2 * m * d_hid),                # exp + approx-recip
        bytes_accessed=int(x2.size * itemsize
                           + w1.size * w1.dtype.itemsize
                           + w2.size * w2.dtype.itemsize
                           + (d_hid + d_out) * 4
                           + m * d_out * itemsize),
    )

    vmem_limit = int(min(64 << 20, max(16 << 20, vmem_estimate(tm) + (8 << 20))))

    out = pl.pallas_call(
        _mlp_kernel,
        out_shape=jax.ShapeDtypeStruct((m, d_out), x.dtype),
        grid_spec=pltpu.PrefetchScalarGridSpec(
            num_scalar_prefetch=0,
            grid=grid,
            in_specs=[
                pl.BlockSpec((tm, d_in), lambda i, k: (i, 0)),   # row tiles
                pl.BlockSpec((d_in, tk), lambda i, k: (0, k)),   # fc1 chunk
                pl.BlockSpec((1, tk), lambda i, k: (0, k)),      # b1 chunk
                pl.BlockSpec((tk, d_out), lambda i, k: (k, 0)),  # fc2 chunk
                pl.BlockSpec((1, d_out), lambda i, k: (0, 0)),   # b2 (constant)
            ],
            out_specs=pl.BlockSpec((tm, d_out), lambda i, k: (i, 0)),
            scratch_shapes=[pltpu.VMEM((tm, d_out), jnp.float32)],
        ),
        compiler_params=pltpu.CompilerParams(
            dimension_semantics=("parallel", "arbitrary"),
            vmem_limit_bytes=vmem_limit,
        ),
        cost_estimate=cost,
    )(x2, w1, b1.reshape(1, d_hid), w2, b2.reshape(1, d_out))

    return out.reshape(*lead, d_out)


class Mlp:
    """JAX/Pallas mirror of the PyTorch `Mlp` module (Linear path).

    Weight layout: w1 == fc1.weight.T (in, hidden), w2 == fc2.weight.T
    (hidden, out), biases as (hidden,) / (out,).  Hidden/out feature dims are
    zero-padded to multiples of 128 once at construction (exact: padded hidden
    units produce gelu(0)=0, padded output columns are sliced off), and the
    weights are stored in bf16 for MXU throughput while biases stay f32.
    """
    # TODO(synk): use_conv1=True Conv1d(kernel_size=3, padding='same') path is
    #             not implemented in Pallas (Linear path only).
    # TODO(synk): training-mode nn.Dropout with drop>0 is not implemented;
    #             drop=0.0 / eval semantics (identity) only.

    def __init__(self, w1, b1, w2, b2, drop=0.0, use_conv1=False,
                 mxu_dtype=jnp.bfloat16):
        if use_conv1:
            raise NotImplementedError("use_conv1=True path not implemented")
        d_in, d_hid = w1.shape
        d_hid2, d_out = w2.shape
        assert d_hid2 == d_hid and b1.shape == (d_hid,) and b2.shape == (d_out,)

        d_hid_p = _round_up(d_hid, 128)
        d_out_p = _round_up(d_out, 128)
        w1 = jnp.pad(w1, ((0, 0), (0, d_hid_p - d_hid)))
        b1 = jnp.pad(b1, (0, d_hid_p - d_hid))
        w2 = jnp.pad(w2, ((0, d_hid_p - d_hid), (0, d_out_p - d_out)))
        b2 = jnp.pad(b2, (0, d_out_p - d_out))

        self.w1 = w1.astype(mxu_dtype)
        self.w2 = w2.astype(mxu_dtype)
        self.b1 = b1.astype(jnp.float32)
        self.b2 = b2.astype(jnp.float32)
        self.d_out = d_out
        self.drop = drop
        self.training = False  # eval mode: dropout is identity

    def __call__(self, x):
        out = mlp_pallas(x, self.w1, self.b1, self.w2, self.b2)
        return out[..., :self.d_out]


if __name__ == "__main__":
    key = jax.random.PRNGKey(0)
    kx, k1, k2, k3, k4 = jax.random.split(key, 5)

    B, N = 2, 8
    in_features, hidden_features, out_features = 32, 128, 32

    x = jax.random.normal(kx, (B, N, in_features), dtype=jnp.float32)
    w1 = 0.05 * jax.random.normal(k1, (in_features, hidden_features), jnp.float32)
    b1 = 0.02 * jax.random.normal(k2, (hidden_features,), jnp.float32)
    w2 = 0.05 * jax.random.normal(k3, (hidden_features, out_features), jnp.float32)
    b2 = 0.02 * jax.random.normal(k4, (out_features,), jnp.float32)

    mlp = Mlp(w1, b1, w2, b2, drop=0.0, use_conv1=False)
    out = jax.block_until_ready(mlp(x))

    # Pure-JAX f32 reference with exact (erf) GELU, matching torch.nn.GELU().
    h_ref = jnp.einsum("bnd,dh->bnh", x, w1) + b1
    h_ref = jax.nn.gelu(h_ref, approximate=False)
    ref = jnp.einsum("bnh,ho->bno", h_ref, w2) + b2

    assert out.shape == ref.shape
    max_err = float(jnp.max(jnp.abs(out - ref)))
    # Tolerance deliberately relaxed: the kernel feeds the MXU bf16 operands
    # (f32 accumulation), per the performance review.
    assert jnp.allclose(out, ref, atol=2.5e-2, rtol=2.5e-2), f"max abs err {max_err}"
    print("KERNEL_OK")
</pallas_src>

<mosaic_0001>
module attributes {stable_mosaic.version = 11 : i64} {
  func.func @_mlp_kernel(%arg0: i32, %arg1: i32, %arg2: memref<8x32xf32, #tpu.memory_space<vmem>>, %arg3: memref<32x128xbf16, #tpu.memory_space<vmem>>, %arg4: memref<1x128xf32, #tpu.memory_space<vmem>>, %arg5: memref<128x128xbf16, #tpu.memory_space<vmem>>, %arg6: memref<1x128xf32, #tpu.memory_space<vmem>>, %arg7: memref<8x128xf32, #tpu.memory_space<vmem>>, %arg8: memref<8x128xf32, #tpu.memory_space<vmem>>) attributes {dimension_semantics = [#tpu.dimension_semantics<parallel>, #tpu.dimension_semantics<arbitrary>], iteration_bounds = array<i64: 2, 1>, scalar_prefetch = 0 : i64, scratch_operands = 1 : i64, tpu.core_type = #tpu.core_type<tc>, window_params = [{transform_indices = @transform_0, window_bounds = array<i64: 8, 32>}, {transform_indices = @transform_1, window_bounds = array<i64: 32, 128>}, {transform_indices = @transform_2, window_bounds = array<i64: 1, 128>}, {transform_indices = @transform_3, window_bounds = array<i64: 128, 128>}, {pipeline_mode = #tpu.pipeline_mode<synchronous>, transform_indices = @transform_4, window_bounds = array<i64: 1, 128>}, {transform_indices = @transform_5, window_bounds = array<i64: 8, 128>}]} {
    %c0_i32 = arith.constant 0 : i32
    %0 = arith.cmpi eq, %arg1, %c0_i32 : i32
    %1 = arith.extui %0 : i1 to i32
    %c0_i32_0 = arith.constant 0 : i32
    %2 = arith.cmpi ne, %1, %c0_i32_0 : i32
    scf.if %2 {
      %cst_25 = arith.constant 0.000000e+00 : f32
      %50 = vector.broadcast %cst_25 : f32 to vector<8x128xf32>
      %c0_26 = arith.constant 0 : index
      %c0_27 = arith.constant 0 : index
      %51 = vector.load %arg8[%c0_26, %c0_27] : memref<8x128xf32, #tpu.memory_space<vmem>>, vector<8x128xf32>
      tpu.vector_store %arg8[%c0_26, %c0_27], %50 {strides = array<i32>} : memref<8x128xf32, #tpu.memory_space<vmem>>, vector<8x128xf32>,
    } else {
    }
    %c0 = arith.constant 0 : index
    %c0_1 = arith.constant 0 : index
    %3 = vector.load %arg2[%c0, %c0_1] : memref<8x32xf32, #tpu.memory_space<vmem>>, vector<8x32xf32>
    %4 = arith.truncf %3 : vector<8x32xf32> to vector<8x32xbf16>
    %c0_2 = arith.constant 0 : index
    %c0_3 = arith.constant 0 : index
    %5 = vector.load %arg3[%c0_2, %c0_3] : memref<32x128xbf16, #tpu.memory_space<vmem>>, vector<32x128xbf16>
    %cst = arith.constant dense<0.000000e+00> : vector<8x128xf32>
    %6 = tpu.matmul %4, %5, %cst {dimension_numbers = #tpu.dot_dimension_numbers<[1], [0], [0], [1], [0, 0, 1, 1], [], []>} : vector<8x32xbf16>, vector<32x128xbf16>, vector<8x128xf32> -> vector<8x128xf32>
    %c0_4 = arith.constant 0 : index
    %c0_5 = arith.constant 0 : index
    %7 = vector.load %arg4[%c0_4, %c0_5] : memref<1x128xf32, #tpu.memory_space<vmem>>, vector<1x128xf32>
    %8 = vector.broadcast %7 : vector<1x128xf32> to vector<8x128xf32>
    %9 = arith.addf %6, %8 : vector<8x128xf32>
    %10 = math.absf %9 : vector<8x128xf32>
    %cst_6 = arith.constant 0.707106769 : f32
    %11 = vector.broadcast %cst_6 : f32 to vector<8x128xf32>
    %12 = arith.mulf %10, %11 : vector<8x128xf32>
    %cst_7 = arith.constant 0.327591091 : f32
    %13 = vector.broadcast %cst_7 : f32 to vector<8x128xf32>
    %14 = arith.mulf %13, %12 : vector<8x128xf32>
    %cst_8 = arith.constant 1.000000e+00 : f32
    %15 = vector.broadcast %cst_8 : f32 to vector<8x128xf32>
    %16 = arith.addf %15, %14 : vector<8x128xf32>
    %17 = tpu.reciprocal %16 {approx = true} : vector<8x128xf32> -> vector<8x128xf32>
    %cst_9 = arith.constant 0.53070271 : f32
    %18 = vector.broadcast %cst_9 : f32 to vector<8x128xf32>
    %19 = arith.mulf %17, %18 : vector<8x128xf32>
    %cst_10 = arith.constant -0.72657603 : f32
    %20 = vector.broadcast %cst_10 : f32 to vector<8x128xf32>
    %21 = arith.addf %20, %19 : vector<8x128xf32>
    %22 = arith.mulf %17, %21 : vector<8x128xf32>
    %cst_11 = arith.constant 0.710706889 : f32
    %23 = vector.broadcast %cst_11 : f32 to vector<8x128xf32>
    %24 = arith.addf %23, %22 : vector<8x128xf32>
    %25 = arith.mulf %17, %24 : vector<8x128xf32>
    %cst_12 = arith.constant -0.142248362 : f32
    %26 = vector.broadcast %cst_12 : f32 to vector<8x128xf32>
    %27 = arith.addf %26, %25 : vector<8x128xf32>
    %28 = arith.mulf %17, %27 : vector<8x128xf32>
    %cst_13 = arith.constant 0.127414793 : f32
    %29 = vector.broadcast %cst_13 : f32 to vector<8x128xf32>
    %30 = arith.addf %29, %28 : vector<8x128xf32>
    %31 = arith.mulf %17, %30 : vector<8x128xf32>
    %cst_14 = arith.constant 0.000000e+00 : f32
    %32 = vector.broadcast %cst_14 : f32 to vector<8x128xf32>
    %33 = arith.maximumf %9, %32 : vector<8x128xf32>
    %34 = arith.mulf %10, %31 : vector<8x128xf32>
    %35 = arith.mulf %12, %12 : vector<8x128xf32>
    %cst_15 = arith.constant 0.000000e+00 : f32
    %36 = vector.broadcast %cst_15 : f32 to vector<8x128xf32>
    %37 = arith.subf %36, %35 : vector<8x128xf32>
    %38 = math.exp %37 : vector<8x128xf32>
    %39 = arith.mulf %34, %38 : vector<8x128xf32>
    %40 = arith.subf %33, %39 : vector<8x128xf32>
    %c0_16 = arith.constant 0 : index
    %c0_17 = arith.constant 0 : index
    %41 = vector.load %arg8[%c0_16, %c0_17] : memref<8x128xf32, #tpu.memory_space<vmem>>, vector<8x128xf32>
    %42 = arith.truncf %40 : vector<8x128xf32> to vector<8x128xbf16>
    %c0_18 = arith.constant 0 : index
    %c0_19 = arith.constant 0 : index
    %43 = vector.load %arg5[%c0_18, %c0_19] : memref<128x128xbf16, #tpu.memory_space<vmem>>, vector<128x128xbf16>
    %cst_20 = arith.constant dense<0.000000e+00> : vector<8x128xf32>
    %44 = tpu.matmul %42, %43, %cst_20 {dimension_numbers = #tpu.dot_dimension_numbers<[1], [0], [0], [1], [0, 0, 1, 1], [], []>} : vector<8x128xbf16>, vector<128x128xbf16>, vector<8x128xf32> -> vector<8x128xf32>
    %45 = arith.addf %41, %44 : vector<8x128xf32>
    %c0_21 = arith.constant 0 : index
    %c0_22 = arith.constant 0 : index
    %46 = vector.load %arg8[%c0_21, %c0_22] : memref<8x128xf32, #tpu.memory_space<vmem>>, vector<8x128xf32>
    tpu.vector_store %arg8[%c0_21, %c0_22], %45 {strides = array<i32>} : memref<8x128xf32, #tpu.memory_space<vmem>>, vector<8x128xf32>,
    %c0_i32_23 = arith.constant 0 : i32
    %47 = arith.cmpi eq, %arg1, %c0_i32_23 : i32
    %48 = arith.extui %47 : i1 to i32
    %c0_i32_24 = arith.constant 0 : i32
    %49 = arith.cmpi ne, %48, %c0_i32_24 : i32
    scf.if %49 {
      %c0_25 = arith.constant 0 : index
      %c0_26 = arith.constant 0 : index
      %50 = vector.load %arg8[%c0_25, %c0_26] : memref<8x128xf32, #tpu.memory_space<vmem>>, vector<8x128xf32>
      %c0_27 = arith.constant 0 : index
      %c0_28 = arith.constant 0 : index
      %51 = vector.load %arg6[%c0_27, %c0_28] : memref<1x128xf32, #tpu.memory_space<vmem>>, vector<1x128xf32>
      %52 = vector.broadcast %51 : vector<1x128xf32> to vector<8x128xf32>
      %53 = arith.addf %50, %52 : vector<8x128xf32>
      %c0_29 = arith.constant 0 : index
      %c0_30 = arith.constant 0 : index
      %54 = vector.load %arg7[%c0_29, %c0_30] : memref<8x128xf32, #tpu.memory_space<vmem>>, vector<8x128xf32>
      tpu.vector_store %arg7[%c0_29, %c0_30], %53 {strides = array<i32>} : memref<8x128xf32, #tpu.memory_space<vmem>>, vector<8x128xf32>,
    } else {
    }
    return
  }
  func.func @transform_0(%arg0: i32, %arg1: i32) -> (i32, i32) {
    %c0_i32 = arith.constant 0 : i32
    %c0_i32_0 = arith.constant 0 : i32
    return %arg0, %c0_i32 : i32, i32
  }
  func.func @transform_1(%arg0: i32, %arg1: i32) -> (i32, i32) {
    %c0_i32 = arith.constant 0 : i32
    %c0_i32_0 = arith.constant 0 : i32
    return %c0_i32, %arg1 : i32, i32
  }
  func.func @transform_2(%arg0: i32, %arg1: i32) -> (i32, i32) {
    %c0_i32 = arith.constant 0 : i32
    %c0_i32_0 = arith.constant 0 : i32
    return %c0_i32, %arg1 : i32, i32
  }
  func.func @transform_3(%arg0: i32, %arg1: i32) -> (i32, i32) {
    %c0_i32 = arith.constant 0 : i32
    %c0_i32_0 = arith.constant 0 : i32
    return %arg1, %c0_i32 : i32, i32
  }
  func.func @transform_4(%arg0: i32, %arg1: i32) -> (i32, i32) {
    %c0_i32 = arith.constant 0 : i32
    %c0_i32_0 = arith.constant 0 : i32
    %c0_i32_1 = arith.constant 0 : i32
    return %c0_i32, %c0_i32_0 : i32, i32
  }
  func.func @transform_5(%arg0: i32, %arg1: i32) -> (i32, i32) {
    %c0_i32 = arith.constant 0 : i32
    %c0_i32_0 = arith.constant 0 : i32
    return %arg0, %c0_i32 : i32, i32
  }
}

</mosaic_0001>

<llo_original>
// kernel: tpu_custom_call.1
$region0: #{tpu_custom_call.1}
  #allocation0 [shape = 'u32[]', space=smem, size = 0x4, offset = 0x4, fixed_abs, tag = 'smem constant byte address 0x4 - core index']
  #allocation1 [shape = 'u32[144,128]{1,0:T(1,128)}', space=vmem, size = 0x12000, scoped, tag = 'internal scratch']
  #allocation2 [shape = 'f32[8,128]{1,0:T(8,128)}', space=vmem, size = 0x1000, scoped, tag = 'scratch operand']
  %s0 = inlined_call_operand.hbm [shape: f32[16,32], index: 0, kind: input, shape index: {}]
  %s1 = inlined_call_operand.hbm [shape: bf16[32,128], index: 1, kind: input, shape index: {}]
  %s2 = inlined_call_operand.vmem [shape: f32[1,128], index: 2, kind: input, shape index: {}]
  %s3 = inlined_call_operand.hbm [shape: bf16[128,128], index: 3, kind: input, shape index: {}]
  %s4 = inlined_call_operand.vmem [shape: f32[1,128], index: 4, kind: input, shape index: {}]
  %s5 = inlined_call_operand.hbm [shape: f32[16,128], index: 5, kind: output, shape index: {}]
  %s6 = sld [smem:[#allocation0]]
  $region73: #{tpu_custom_call.1} parent=0
    _
  %s8 = ssub.s32 1, %s6
  %s9 = scalar_select 0, %s8, %s6
  $region1: #{tpu_custom_call.1} parent=0
    #allocation3 [shape = 'u8[8192]{0}', space=vmem, size = 0x2000, scoped, tag = 'input window, operand 0']
    #allocation4 [shape = 's32[2]{0}', space=sflag, size = 0x8, scoped, tag = 'scoped memory for tpu_custom_call.1']
    #allocation5 [shape = 's32[2]{0}', space=sflag, size = 0x8, scoped, tag = 'scoped memory for tpu_custom_call.1']
    #allocation6 [shape = 'u8[8192]{0}', space=vmem, size = 0x2000, scoped, tag = 'input window, operand 1, single buffered']
    #allocation7 [shape = 's32[1]{0}', space=sflag, size = 0x4, scoped, tag = 'scoped memory for tpu_custom_call.1']
    #allocation8 [shape = 'u8[32768]{0}', space=vmem, size = 0x8000, scoped, tag = 'input window, operand 3, single buffered']
    #allocation9 [shape = 'u8[8192]{0}', space=vmem, size = 0x2000, scoped, tag = 'output window, operand 0']
    %10 = vsyncpa [#allocation4], 0
    %s11 = scalar_lea.sflag [#allocation4], 1
    %12 = vsyncpa %s11, 0
    %13 = vsyncpa [#allocation7], 0
    %14 = vsyncpa [#allocation5], 0
    %s15 = scalar_lea.sflag [#allocation5], 1
    %16 = vsyncpa %s15, 0
    loop: start=0, step=1, limit=4
    $region2: #{tpu_custom_call.1} parent=1 // loop_pre_header
      _
    $region3: #{tpu_custom_call.1} parent=1 // loop_header
      %s18 = sphi 0, %s22
      %p19 = scmp.ge.s32.totalorder %s18, 4
      %s25 = sphi 0, %s37
      %s26 = sphi 0, %s33
      %s27 = sphi 0, %s25
      %s28 = sphi 0, %s26
      %s29 = sphi 0, %s27
      %s30 = sphi 0, %s28
      %s40 = sphi 0, %s42
      %s43 = sphi 0, %s40
      %s44 = sphi 0, %s43
      %s60 = sphi 0, %s44
      %s66 = sphi 0, %s68
      %s69 = sphi 0, %s66
      %s70 = sphi 0, %s69
      %s86 = sphi 0, %s70
      %s92 = sphi 0, %s94
      %s95 = sphi 0, %s92
      %s96 = sphi 0, %s95
      %s112 = sphi 0, %s96
      %s118 = sphi 0, %s120
      %s121 = sphi 0, %s118
      %s122 = sphi 0, %s121
      %s138 = sphi 0, %s122
      %s142 = sphi 0, %s142
      %s144 = sphi 0, %s142
      %s145 = sphi 0, %s144
      %s159 = sphi 0, %s145
      %s165 = sphi 0, %s167
      %s168 = sphi 0, %s165
      %s169 = sphi 0, %s168
      %s185 = sphi 0, %s169
    $region4: #{tpu_custom_call.1} parent=1 // loop_header_branch
      %21 = sbr.rel (%p19) target = $region8
    $region5: #{tpu_custom_call.1} parent=1 // loop_body
      %s23 = ssub.s32 %s18, 1
      %s24 = ssub.s32 %s18, 2
      %s31 = sadd.s32 1, %s26
      %p32 = scmp.ge.s32.totalorder %s31, 1
      %s33 = scalar_select %p32, 0, %s31
      %s34 = sadd.s32 1, %s25
      %s35 = scalar_select %p32, %s34, %s25
      %p36 = scmp.ge.s32.totalorder %s35, 2
      %s37 = scalar_select %p36, 0, %s35
      %s38 = ssub.s32 %s25, %s37
      %p39 = scmp.eq.s32.totalorder %s38, 0
      %s41 = sadd.s32 %s40, 1
      %s42 = scalar_select %p39, %s40, %s41
      %p45 = pneg %p39
      %p46 = scmp.eq.s32.totalorder %s18, 1
      %p47 = por %p45, %p46
      %p48 = scmp.ne.s32.totalorder %s40, %s43
      %p49 = scmp.eq.s32.totalorder %s18, 0
      %p50 = por %p48, %p49
      %p51 = scmp.ne.s32.totalorder %s40, %s43
      %p52 = scmp.eq.s32.totalorder %s23, 1
      %p53 = por %p51, %p52
      %p54 = scmp.ne.s32.totalorder %s43, %s44
      %p55 = scmp.eq.s32.totalorder %s23, 0
      %p56 = por %p54, %p55
      %p57 = scmp.ne.s32.totalorder %s43, %s44
      %p58 = scmp.eq.s32.totalorder %s24, 1
      %p59 = por %p57, %p58
      %p61 = scmp.ne.s32.totalorder %s44, %s60
      %p62 = scmp.eq.s32.totalorder %s24, 0
      %p63 = por %p61, %p62
      %s64 = ssub.s32 %s26, %s33
      %p65 = scmp.eq.s32.totalorder %s64, 0
      %s67 = sadd.s32 %s66, 1
      %s68 = scalar_select %p65, %s66, %s67
      %p71 = pneg %p65
      %p72 = scmp.eq.s32.totalorder %s18, 1
      %p73 = por %p71, %p72
      %p74 = scmp.ne.s32.totalorder %s66, %s69
      %p75 = scmp.eq.s32.totalorder %s18, 0
      %p76 = por %p74, %p75
      %p77 = scmp.ne.s32.totalorder %s66, %s69
      %p78 = scmp.eq.s32.totalorder %s23, 1
      %p79 = por %p77, %p78
      %p80 = scmp.ne.s32.totalorder %s69, %s70
      %p81 = scmp.eq.s32.totalorder %s23, 0
      %p82 = por %p80, %p81
      %p83 = scmp.ne.s32.totalorder %s69, %s70
      %p84 = scmp.eq.s32.totalorder %s24, 1
      %p85 = por %p83, %p84
      %p87 = scmp.ne.s32.totalorder %s70, %s86
      %p88 = scmp.eq.s32.totalorder %s24, 0
      %p89 = por %p87, %p88
      %s90 = ssub.s32 %s26, %s33
      %p91 = scmp.eq.s32.totalorder %s90, 0
      %s93 = sadd.s32 %s92, 1
      %s94 = scalar_select %p91, %s92, %s93
      %p97 = pneg %p91
      %p98 = scmp.eq.s32.totalorder %s18, 1
      %p99 = por %p97, %p98
      %p100 = scmp.ne.s32.totalorder %s92, %s95
      %p101 = scmp.eq.s32.totalorder %s18, 0
      %p102 = por %p100, %p101
      %p103 = scmp.ne.s32.totalorder %s92, %s95
      %p104 = scmp.eq.s32.totalorder %s23, 1
      %p105 = por %p103, %p104
      %p106 = scmp.ne.s32.totalorder %s95, %s96
      %p107 = scmp.eq.s32.totalorder %s23, 0
      %p108 = por %p106, %p107
      %p109 = scmp.ne.s32.totalorder %s95, %s96
      %p110 = scmp.eq.s32.totalorder %s24, 1
      %p111 = por %p109, %p110
      %p113 = scmp.ne.s32.totalorder %s96, %s112
      %p114 = scmp.eq.s32.totalorder %s24, 0
      %p115 = por %p113, %p114
      %s116 = ssub.s32 %s26, %s33
      %p117 = scmp.eq.s32.totalorder %s116, 0
      %s119 = sadd.s32 %s118, 1
      %s120 = scalar_select %p117, %s118, %s119
      %p123 = pneg %p117
      %p124 = scmp.eq.s32.totalorder %s18, 1
      %p125 = por %p123, %p124
      %p126 = scmp.ne.s32.totalorder %s118, %s121
      %p127 = scmp.eq.s32.totalorder %s18, 0
      %p128 = por %p126, %p127
      %p129 = scmp.ne.s32.totalorder %s118, %s121
      %p130 = scmp.eq.s32.totalorder %s23, 1
      %p131 = por %p129, %p130
      %p132 = scmp.ne.s32.totalorder %s121, %s122
      %p133 = scmp.eq.s32.totalorder %s23, 0
      %p134 = por %p132, %p133
      %p135 = scmp.ne.s32.totalorder %s121, %s122
      %p136 = scmp.eq.s32.totalorder %s24, 1
      %p137 = por %p135, %p136
      %p139 = scmp.ne.s32.totalorder %s122, %s138
      %p140 = scmp.eq.s32.totalorder %s24, 0
      %p141 = por %p139, %p140
      %s143 = sadd.s32 %s142, 1
      %p146 = scmp.eq.s32.totalorder %s18, 1
      %p147 = scmp.ne.s32.totalorder %s142, %s144
      %p148 = scmp.eq.s32.totalorder %s18, 0
      %p149 = por %p147, %p148
      %p150 = scmp.ne.s32.totalorder %s142, %s144
      %p151 = scmp.eq.s32.totalorder %s23, 1
      %p152 = por %p150, %p151
      %p153 = scmp.ne.s32.totalorder %s144, %s145
      %p154 = scmp.eq.s32.totalorder %s23, 0
      %p155 = por %p153, %p154
      %p156 = scmp.ne.s32.totalorder %s144, %s145
      %p157 = scmp.eq.s32.totalorder %s24, 1
      %p158 = por %p156, %p157
      %p160 = scmp.ne.s32.totalorder %s145, %s159
      %p161 = scmp.eq.s32.totalorder %s24, 0
      %p162 = por %p160, %p161
      %s163 = ssub.s32 %s25, %s37
      %p164 = scmp.eq.s32.totalorder %s163, 0
      %s166 = sadd.s32 %s165, 1
      %s167 = scalar_select %p164, %s165, %s166
      %p170 = pneg %p164
      %p171 = scmp.eq.s32.totalorder %s18, 1
      %p172 = por %p170, %p171
      %p173 = scmp.ne.s32.totalorder %s165, %s168
      %p174 = scmp.eq.s32.totalorder %s18, 0
      %p175 = por %p173, %p174
      %p176 = scmp.ne.s32.totalorder %s165, %s168
      %p177 = scmp.eq.s32.totalorder %s23, 1
      %p178 = por %p176, %p177
      %p179 = scmp.ne.s32.totalorder %s168, %s169
      %p180 = scmp.eq.s32.totalorder %s23, 0
      %p181 = por %p179, %p180
      %p182 = scmp.ne.s32.totalorder %s168, %s169
      %p183 = scmp.eq.s32.totalorder %s24, 1
      %p184 = por %p182, %p183
      %p186 = scmp.ne.s32.totalorder %s169, %s185
      %p187 = scmp.eq.s32.totalorder %s24, 0
      %p188 = por %p186, %p187
      %p189 = scmp.le.s32.totalorder 1, %s18
      %p190 = scmp.lt.s32.totalorder %s18, 3
      %p191 = pnand %p189, %p190
      %p192 = pneg %p191
      // Predicated region
      $region9: #{tpu_custom_call.1} parent=5 // pred_check
        _
      $region10: #{tpu_custom_call.1} parent=5 // pred_check_branch
        %194 = sbr.rel (%p191) target = $region12
      $region11: #{tpu_custom_call.1} parent=5 // pred_region
        %s195 = ssub.s32 %s18, 1
        // Predicated region
        $region13: #{tpu_custom_call.1} parent=11 // pred_check
          %p196 = pneg %p82
        $region14: #{tpu_custom_call.1} parent=11 // pred_check_branch
          %198 = sbr.rel (%p196) target = $region16
        $region15: #{tpu_custom_call.1} parent=11 // pred_region
          %s200 = ssub.s32 256, 256
          %201 = vsyncadd [#allocation7], %s200
          %s202 = smul.addr %s28, 64
          %s203 = scalar_lea.hbm %s1, %s202
          %s204 = sshll.u32 [#allocation6], 4
          %s205 = int_to_ptr.vmem [resolvable:$true] %s204
          %210 = dma.hbm_to_vmem [thread:$0]  %s203, 256, %s205, [#allocation7], 64, 64, 4
        $region16: #{tpu_custom_call.1} parent=11 // pred_fallthru
          _
        // Predicated region
        $region17: #{tpu_custom_call.1} parent=11 // pred_check
          %p211 = pneg %p108
        $region18: #{tpu_custom_call.1} parent=11 // pred_check_branch
          %213 = sbr.rel (%p211) target = $region20
        $region19: #{tpu_custom_call.1} parent=11 // pred_region
          %p214 = scmp.lt.s32.totalorder %s28, 0
          %s215 = scalar_select %p214, %s28, 0
          %s216 = scalar_lea.vmem %s2, %s215
        $region20: #{tpu_custom_call.1} parent=11 // pred_fallthru
          _
        // Predicated region
        $region21: #{tpu_custom_call.1} parent=11 // pred_check
          %p217 = pneg %p134
        $region22: #{tpu_custom_call.1} parent=11 // pred_check_branch
          %219 = sbr.rel (%p217) target = $region24
        $region23: #{tpu_custom_call.1} parent=11 // pred_region
          %s220 = smul.u32 16, %s28
          %s222 = ssub.s32 1024, 1024
          %223 = vsyncadd [#allocation7], %s222
          %s224 = smul.addr %s220, 64
          %s225 = scalar_lea.hbm %s3, %s224
          %s226 = sshll.u32 [#allocation8], 4
          %s227 = int_to_ptr.vmem [resolvable:$true] %s226
          %232 = dma.hbm_to_vmem [thread:$0]  %s225, 1024, %s227, [#allocation7], 64, 64, 4
        $region24: #{tpu_custom_call.1} parent=11 // pred_fallthru
          _
        // Predicated region
        $region25: #{tpu_custom_call.1} parent=11 // pred_check
          %p233 = pneg %p155
        $region26: #{tpu_custom_call.1} parent=11 // pred_check_branch
          %235 = sbr.rel (%p233) target = $region28
        $region27: #{tpu_custom_call.1} parent=11 // pred_region
          _
        $region28: #{tpu_custom_call.1} parent=11 // pred_fallthru
          _
      $region12: #{tpu_custom_call.1} parent=5 // pred_fallthru
        _
      %p236 = scmp.lt.s32.totalorder %s18, 2
      // Predicated region
      $region29: #{tpu_custom_call.1} parent=5 // pred_check
        %p237 = pneg %p236
      $region30: #{tpu_custom_call.1} parent=5 // pred_check_branch
        %239 = sbr.rel (%p237) target = $region32
      $region31: #{tpu_custom_call.1} parent=5 // pred_region
        // Predicated region
        $region33: #{tpu_custom_call.1} parent=31 // pred_check
          %p240 = pneg %p50
        $region34: #{tpu_custom_call.1} parent=31 // pred_check_branch
          %242 = sbr.rel (%p240) target = $region36
        $region35: #{tpu_custom_call.1} parent=31 // pred_region
          %s243 = sand.u32 %s40, 1
          %s244 = scalar_lea.sflag [#allocation4], %s243
          %s245 = sand.u32 %s40, 1
          %s246 = smul.addr %s245, 8
          %s247 = scalar_lea.vmem [#allocation3], %s246
          %s249 = ssub.s32 128, 128
          %250 = vsyncadd %s244, %s249
          %s251 = smul.addr %s25, 128
          %s252 = scalar_lea.hbm %s0, %s251
          %s254 = sshll.u32 %s247, 4
          %s255 = int_to_ptr.vmem [resolvable:$true] %s254
          %257 = dma.hbm_to_vmem [thread:$0]  %s252, 128, %s255, %s244
        $region36: #{tpu_custom_call.1} parent=31 // pred_fallthru
          _
      $region32: #{tpu_custom_call.1} parent=5 // pred_fallthru
        _
      %p258 = scmp.le.s32.totalorder 1, %s18
      %p259 = scmp.lt.s32.totalorder %s18, 3
      %p260 = pnand %p258, %p259
      %p261 = pneg %p260
      // Predicated region
      $region37: #{tpu_custom_call.1} parent=5 // pred_check
        _
      $region38: #{tpu_custom_call.1} parent=5 // pred_check_branch
        %263 = sbr.rel (%p260) target = $region40
      $region39: #{tpu_custom_call.1} parent=5 // pred_region
        %s264 = ssub.s32 %s18, 1
        %s265 = sand.u32 %s43, 1
        %s266 = scalar_lea.sflag [#allocation4], %s265
        %s267 = sand.u32 %s43, 1
        %s268 = smul.addr %s267, 8
        %s269 = scalar_lea.vmem [#allocation3], %s268
        // Predicated region
        $region41: #{tpu_custom_call.1} parent=39 // pred_check
          %p270 = pneg %p56
        $region42: #{tpu_custom_call.1} parent=39 // pred_check_branch
          %272 = sbr.rel (%p270) target = $region44
        $region43: #{tpu_custom_call.1} parent=39 // pred_region
          %273 = dma.done %s266, 128
        $region44: #{tpu_custom_call.1} parent=39 // pred_fallthru
          _
        // Predicated region
        $region45: #{tpu_custom_call.1} parent=39 // pred_check
          %p274 = pneg %p82
        $region46: #{tpu_custom_call.1} parent=39 // pred_check_branch
          %276 = sbr.rel (%p274) target = $region48
        $region47: #{tpu_custom_call.1} parent=39 // pred_region
          %277 = dma.done [#allocation7], 256
        $region48: #{tpu_custom_call.1} parent=39 // pred_fallthru
          _
        // Predicated region
        $region49: #{tpu_custom_call.1} parent=39 // pred_check
          %p278 = pneg %p134
        $region50: #{tpu_custom_call.1} parent=39 // pred_check_branch
          %280 = sbr.rel (%p278) target = $region52
        $region51: #{tpu_custom_call.1} parent=39 // pred_region
          %281 = dma.done [#allocation7], 1024
        $region52: #{tpu_custom_call.1} parent=39 // pred_fallthru
          _
        %s282 = sand.u32 %s43, 1
        %s283 = scalar_lea.sflag [#allocation4], %s282
        %s284 = sand.u32 %s43, 1
        %s285 = smul.addr %s284, 8
        %s286 = scalar_lea.vmem [#allocation3], %s285
        %p287 = pneg %p56
        %p288 = pneg %p53
        %p289 = pneg %p82
        %p290 = pneg %p79
        %p291 = scmp.lt.s32.totalorder %s28, 0
        %s292 = scalar_select %p291, %s28, 0
        %s293 = scalar_lea.vmem %s2, %s292
        %p294 = pneg %p108
        %p295 = pneg %p105
        %p296 = pneg %p134
        %p297 = pneg %p131
        %p298 = pneg %p155
        %p299 = pneg %p152
        %p300 = pneg %p181
        %p301 = pneg %p178
        %s302 = sand.u32 %s168, 1
        %s303 = scalar_lea.sflag [#allocation5], %s302
        %s304 = sand.u32 %s168, 1
        %s305 = smul.addr %s304, 8
        %s306 = scalar_lea.vmem [#allocation9], %s305
        %p307 = scmp.lt.s32.totalorder %s28, 0
        %s308 = scalar_select %p307, %s28, 0
        %s309 = scalar_lea.vmem %s2, %s308
        %s310 = smul.u32 16, %s28
        %p312 = scmp.eq.s32.totalorder %s28, 0
        // Predicated region
        $region53: #{tpu_custom_call.1} parent=39 // pred_check
          %p313 = pneg %p312
        $region54: #{tpu_custom_call.1} parent=39 // pred_check_branch
          %315 = sbr.rel (%p313) target = $region56
        $region55: #{tpu_custom_call.1} parent=39 // pred_region
          %316 = vst [vmem:[#allocation2] sm:$0xff] 0.0
        $region56: #{tpu_custom_call.1} parent=39 // pred_fallthru
          _
        %v317 = vld [vmem:[%s269] sm:$0xff]
        %v318 = vpack.c.bf16 %v317, %v317
        %v319 = vld [vmem:[#allocation6] sm:$0xf]
        %v320 = vld [vmem:[#allocation6 + $0x4] sm:$0xf]
        %v321 = vld [vmem:[#allocation6 + $0x8] sm:$0xf]
        %v322 = vld [vmem:[#allocation6 + $0xc] sm:$0xf]
        %v323 = vld [vmem:[%s309] sm:$0x1]
        %v325 = vlaneseq
        %v326 = vshrl.u32 %v325, 7
        %v327 = vsub.s32 0, %v326
        %v328 = vrot.slane %v323, %v327
        %v334 = vunpack.c.l.b16 %v319
        %v335 = vunpack.c.l.b16 %v320
        %v336 = vunpack.c.l.b16 %v321
        %v337 = vunpack.c.l.b16 %v322
        %v338 = vpack.c.b16 %v335, %v334
        %v339 = vpack.c.b16 %v337, %v336
        %vm342 = vcmask 261120
        %v344 = vsel %vm342, %v318, 0
        %346 = vmatprep.subr.bf16.mxu0 0
        %347 = vmatpush1.bf16.msra.mxu0 %v338
        %348 = vmatprep.subr.bf16.mxu0 0
        %349 = vmatpush1.bf16.msra.mxu0 %v339
        %350 = vmatprep.subr.bf16.mxu0 0
        %351 = vmatpush1.bf16.msra.mxu0 0
        %352 = vmatprep.subr.bf16.mxu0 0
        %353 = vmatpush1.bf16.msra.mxu0 0
        %354 = vmatprep.subr.bf16.mxu0 0
        %355 = vmatpush1.bf16.msra.mxu0 0
        %356 = vmatprep.subr.bf16.mxu0 0
        %357 = vmatpush1.bf16.msra.mxu0 0
        %358 = vmatprep.subr.bf16.mxu0 0
        %359 = vmatpush1.bf16.msra.mxu0 0
        %360 = vmatprep.subr.bf16.mxu0 0
        %361 = vmatpush1.bf16.msra.mxu0 0
        %362 = vmatprep.subr.bf16.mxu0 0
        %363 = vmatpush1.bf16.msra.mxu0 0
        %364 = vmatprep.subr.bf16.mxu0 0
        %365 = vmatpush1.bf16.msra.mxu0 0
        %366 = vmatprep.subr.bf16.mxu0 0
        %367 = vmatpush1.bf16.msra.mxu0 0
        %368 = vmatprep.subr.bf16.mxu0 0
        %369 = vmatpush1.bf16.msra.mxu0 0
        %370 = vmatprep.subr.bf16.mxu0 0
        %371 = vmatpush1.bf16.msra.mxu0 0
        %372 = vmatprep.subr.bf16.mxu0 0
        %373 = vmatpush1.bf16.msra.mxu0 0
        %374 = vmatprep.subr.bf16.mxu0 0
        %375 = vmatpush1.bf16.msra.mxu0 0
        %376 = vmatprep.subr.bf16.mxu0 0
        %377 = vmatpush1.bf16.msra.mxu0 0
        %378 = vmatprep.mubr.bf16.mxu0 0
        %379 = vmatmul.mubr.bf16.gmra.mrb[0].mxu0 %v344
        %v380 = vpop.f32.mrb[0].mxu0
        %v381 = vadd.f32 %v328, %v380
        %v382 = vpop.f32.mrb[0].mxu0
        %v383 = vpop.f32.mrb[0].mxu0
        %v384 = vpop.f32.mrb[0].mxu0
        %385 = vdwg.mxu0
        %v386 = vand.u32 2147483647, %v381
        %v387 = vmul.f32 %v386, 0.70710677
        %v388 = vmul.f32 %v387, 0.3275911
        %v389 = vadd.f32 %v388, 1.0
        %v390 = vrcp.pop %v389
        %v391 = vmul.f32 %v390, 0.5307027
        %v392 = vadd.f32 %v391, -0.72657603
        %v393 = vmul.f32 %v390, %v392
        %v394 = vadd.f32 %v393, 0.7107069
        %v395 = vmul.f32 %v390, %v394
        %v396 = vadd.f32 %v395, -0.14224836
        %v397 = vmul.f32 %v390, %v396
        %v398 = vadd.f32 %v397, 0.1274148
        %v399 = vmul.f32 %v390, %v398
        %v400 = vmax.f32 %v381, 0.0
        %v401 = vmul.f32 %v386, %v399
        %v402 = vmul.f32 %v387, %v387
        %v403 = vsub.f32 0.0, %v402
        %v404 = vmul.f32 %v403, 1.442695
        %v405 = vpow.pop %v404
        %v406 = vmul.f32 %v401, %v405
        %v407 = vsub.f32 %v400, %v406
        %v408 = vld [vmem:[#allocation2] sm:$0xff]
        %v409 = vpack.c.bf16 %v407, %v407
        %v410 = vld [vmem:[#allocation8] sm:$0xf]
        %v411 = vld [vmem:[#allocation8 + $0x4] sm:$0xf]
        %v412 = vld [vmem:[#allocation8 + $0x8] sm:$0xf]
        %v413 = vld [vmem:[#allocation8 + $0xc] sm:$0xf]
        %v414 = vld [vmem:[#allocation8 + $0x10] sm:$0xf]
        %v415 = vld [vmem:[#allocation8 + $0x14] sm:$0xf]
        %v416 = vld [vmem:[#allocation8 + $0x18] sm:$0xf]
        %v417 = vld [vmem:[#allocation8 + $0x1c] sm:$0xf]
        %v418 = vld [vmem:[#allocation8 + $0x20] sm:$0xf]
        %v419 = vld [vmem:[#allocation8 + $0x24] sm:$0xf]
        %v420 = vld [vmem:[#allocation8 + $0x28] sm:$0xf]
        %v421 = vld [vmem:[#allocation8 + $0x2c] sm:$0xf]
        %v422 = vld [vmem:[#allocation8 + $0x30] sm:$0xf]
        %v423 = vld [vmem:[#allocation8 + $0x34] sm:$0xf]
        %v424 = vld [vmem:[#allocation8 + $0x38] sm:$0xf]
        %v425 = vld [vmem:[#allocation8 + $0x3c] sm:$0xf]
        %v442 = vunpack.c.l.b16 %v410
        %v443 = vunpack.c.l.b16 %v411
        %v444 = vunpack.c.l.b16 %v412
        %v445 = vunpack.c.l.b16 %v413
        %v446 = vunpack.c.l.b16 %v414
        %v447 = vunpack.c.l.b16 %v415
        %v448 = vunpack.c.l.b16 %v416
        %v449 = vunpack.c.l.b16 %v417
        %v450 = vunpack.c.l.b16 %v418
        %v451 = vunpack.c.l.b16 %v419
        %v452 = vunpack.c.l.b16 %v420
        %v453 = vunpack.c.l.b16 %v421
        %v454 = vunpack.c.l.b16 %v422
        %v455 = vunpack.c.l.b16 %v423
        %v456 = vunpack.c.l.b16 %v424
        %v457 = vunpack.c.l.b16 %v425
        %v458 = vpack.c.b16 %v443, %v442
        %v459 = vpack.c.b16 %v445, %v444
        %v460 = vpack.c.b16 %v447, %v446
        %v461 = vpack.c.b16 %v449, %v448
        %v462 = vpack.c.b16 %v451, %v450
        %v463 = vpack.c.b16 %v453, %v452
        %v464 = vpack.c.b16 %v455, %v454
        %v465 = vpack.c.b16 %v457, %v456
        %474 = vmatprep.subr.bf16.mxu0 0
        %475 = vmatpush1.bf16.msra.mxu0 %v458
        %476 = vmatprep.subr.bf16.mxu0 0
        %477 = vmatpush1.bf16.msra.mxu0 %v459
        %478 = vmatprep.subr.bf16.mxu0 0
        %479 = vmatpush1.bf16.msra.mxu0 %v460
        %480 = vmatprep.subr.bf16.mxu0 0
        %481 = vmatpush1.bf16.msra.mxu0 %v461
        %482 = vmatprep.subr.bf16.mxu0 0
        %483 = vmatpush1.bf16.msra.mxu0 %v462
        %484 = vmatprep.subr.bf16.mxu0 0
        %485 = vmatpush1.bf16.msra.mxu0 %v463
        %486 = vmatprep.subr.bf16.mxu0 0
        %487 = vmatpush1.bf16.msra.mxu0 %v464
        %488 = vmatprep.subr.bf16.mxu0 0
        %489 = vmatpush1.bf16.msra.mxu0 %v465
        %490 = vmatprep.subr.bf16.mxu0 0
        %491 = vmatpush1.bf16.msra.mxu0 0
        %492 = vmatprep.subr.bf16.mxu0 0
        %493 = vmatpush1.bf16.msra.mxu0 0
        %494 = vmatprep.subr.bf16.mxu0 0
        %495 = vmatpush1.bf16.msra.mxu0 0
        %496 = vmatprep.subr.bf16.mxu0 0
        %497 = vmatpush1.bf16.msra.mxu0 0
        %498 = vmatprep.subr.bf16.mxu0 0
        %499 = vmatpush1.bf16.msra.mxu0 0
        %500 = vmatprep.subr.bf16.mxu0 0
        %501 = vmatpush1.bf16.msra.mxu0 0
        %502 = vmatprep.subr.bf16.mxu0 0
        %503 = vmatpush1.bf16.msra.mxu0 0
        %504 = vmatprep.subr.bf16.mxu0 0
        %505 = vmatpush1.bf16.msra.mxu0 0
        %506 = vmatprep.mubr.bf16.mxu0 0
        %507 = vmatmul.mubr.bf16.gmra.mrb[0].mxu0 %v409
        %v508 = vpop.f32.mrb[0].mxu0
        %v509 = vadd.f32 0.0, %v508
        %v510 = vpop.f32.mrb[0].mxu0
        %v511 = vpop.f32.mrb[0].mxu0
        %v512 = vpop.f32.mrb[0].mxu0
        %513 = vdwg.mxu0
        %v514 = vadd.f32 %v408, %v509
        %515 = vst [vmem:[#allocation2] sm:$0xff] %v514
        // Predicated region
        $region57: #{tpu_custom_call.1} parent=39 // pred_check
          %p516 = pneg %p312
        $region58: #{tpu_custom_call.1} parent=39 // pred_check_branch
          %518 = sbr.rel (%p516) target = $region60
        $region59: #{tpu_custom_call.1} parent=39 // pred_region
          %v519 = vld [vmem:[#allocation2] sm:$0xff]
          %v520 = vld [vmem:[%s4] sm:$0x1]
          %v522 = vlaneseq
          %v523 = vshrl.u32 %v522, 7
          %v524 = vsub.s32 0, %v523
          %v525 = vrot.slane %v520, %v524
          %v527 = vadd.f32 %v519, %v525
          %528 = vst [vmem:[%s306] sm:$0xff] %v527
        $region60: #{tpu_custom_call.1} parent=39 // pred_fallthru
          _
        %s529 = sand.u32 %s168, 1
        %s530 = scalar_lea.sflag [#allocation5], %s529
        %s531 = sand.u32 %s168, 1
        %s532 = smul.addr %s531, 8
        %s533 = scalar_lea.vmem [#allocation9], %s532
        // Predicated region
        $region61: #{tpu_custom_call.1} parent=39 // pred_check
          %p534 = pneg %p178
        $region62: #{tpu_custom_call.1} parent=39 // pred_check_branch
          %536 = sbr.rel (%p534) target = $region64
        $region63: #{tpu_custom_call.1} parent=39 // pred_region
          %s538 = ssub.s32 128, 128
          %539 = vsyncadd %s530, %s538
          %s540 = smul.addr %s27, 128
          %s541 = scalar_lea.hbm %s5, %s540
          %s543 = sshll.u32 %s533, 4
          %s544 = int_to_ptr.vmem [resolvable:$true] %s543
          %546 = dma.vmem_to_hbm [thread:$0]  %s544, 128, %s541, %s530
        $region64: #{tpu_custom_call.1} parent=39 // pred_fallthru
          _
      $region40: #{tpu_custom_call.1} parent=5 // pred_fallthru
        _
      %p547 = scmp.le.s32.totalorder 2, %s18
      // Predicated region
      $region65: #{tpu_custom_call.1} parent=5 // pred_check
        %p548 = pneg %p547
      $region66: #{tpu_custom_call.1} parent=5 // pred_check_branch
        %550 = sbr.rel (%p548) target = $region68
      $region67: #{tpu_custom_call.1} parent=5 // pred_region
        %s551 = ssub.s32 %s18, 2
        // Predicated region
        $region69: #{tpu_custom_call.1} parent=67 // pred_check
          %p552 = pneg %p184
        $region70: #{tpu_custom_call.1} parent=67 // pred_check_branch
          %554 = sbr.rel (%p552) target = $region72
        $region71: #{tpu_custom_call.1} parent=67 // pred_region
          %s555 = sand.u32 %s169, 1
          %s556 = scalar_lea.sflag [#allocation5], %s555
          %s557 = sand.u32 %s169, 1
          %s558 = smul.addr %s557, 8
          %s559 = scalar_lea.vmem [#allocation9], %s558
          %560 = dma.done %s556, 128
        $region72: #{tpu_custom_call.1} parent=67 // pred_fallthru
          _
      $region68: #{tpu_custom_call.1} parent=5 // pred_fallthru
        _
    $region6: #{tpu_custom_call.1} parent=1 // loop_footer
      %s22 = sadd.s32 1, %s18
    $region7: #{tpu_custom_call.1} parent=1 // loop_footer_branch
      %17 = sbr.rel target = $region3
    $region8: #{tpu_custom_call.1} parent=1 // loop_exit
      _
    %561 = vsyncpa [#allocation4], 1
    %s562 = scalar_lea.sflag [#allocation4], 1
    %563 = vsyncpa %s562, 1
    %564 = vsyncpa [#allocation7], 1
    %565 = vsyncpa [#allocation5], 1
    %s566 = scalar_lea.sflag [#allocation5], 1
    %567 = vsyncpa %s566, 1

</llo_original>
